<compile_context>
chip_gen: v5e
topology: v5e:2x2
jax: 0.10.0
libtpu: 0.0.40
codegen_flags: <defaults>
</compile_context>

<pallas_src>
import functools

import jax
import jax.numpy as jnp
from jax.experimental import pallas as pl
from jax.experimental.pallas import tpu as pltpu


def _round_up(x, m):
    return ((x + m - 1) // m) * m


def _gru_chunk_kernel(x_ref,        # (Tc*Bp, D)  f32, time-major, batch-padded chunk
                      w_ih_ref,     # (D, 3*Hp)   bf16, gates r|z|n, 128-aligned
                      w_hh_ref,     # (Hp, 3*Hp)  bf16
                      gi_bias_ref,  # (1, 3*Hp)   f32, b_ih + b_hh(r,z folded; n zeroed)
                      b_hh_n_ref,   # (1, Hp)     f32, n-gate hidden bias (inside r*(.))
                      w_fc_ref,     # (Hp, O)     f32
                      b_fc_ref,     # (1, O)      f32
                      out_ref,      # (Bp, O)     f32
                      h_ref,        # VMEM scratch (Bp, Hp) f32 — carried hidden state
                      *, Tc, Bp, Hp, T_total):
    c = pl.program_id(0)

    @pl.when(c == 0)
    def _():
        h_ref[...] = jnp.zeros_like(h_ref)

    # ---- per-chunk input projection (off the serial chain, SSA value, no scratch
    #      barrier); b_ih and the r/z parts of b_hh are folded in. ---------------
    x_bf = x_ref[...].astype(jnp.bfloat16)
    gi = (jnp.dot(x_bf, w_ih_ref[...], preferred_element_type=jnp.float32)
          + gi_bias_ref[...])                                   # (Tc*Bp, 3Hp) f32

    w_hh = w_hh_ref[...]                                        # bf16, hoisted
    # hoisted bias broadcast (JAX does not CSE broadcast_in_dim inside the loop)
    b_hh_n = jnp.broadcast_to(b_hh_n_ref[...], (Bp, Hp))        # f32

    needs_mask = (T_total % Tc) != 0                            # static

    h = h_ref[...]                                              # (Bp, Hp) f32
    for t in range(Tc):                                         # static unroll, Tc small
        gi_t = gi[t * Bp:(t + 1) * Bp, :]                       # static, sublane-aligned
        # only serial matmul left in the recurrence (bf16 operands, f32 acc)
        gh = jnp.dot(h.astype(jnp.bfloat16), w_hh,
                     preferred_element_type=jnp.float32)        # (Bp, 3Hp) f32
        # 128-lane-aligned gate slices (whole-vreg selects, no XLU work)
        r = jax.nn.sigmoid(gi_t[:, 0 * Hp:1 * Hp] + gh[:, 0 * Hp:1 * Hp])
        z = jax.nn.sigmoid(gi_t[:, 1 * Hp:2 * Hp] + gh[:, 1 * Hp:2 * Hp])
        n = jnp.tanh(gi_t[:, 2 * Hp:3 * Hp] + r * (gh[:, 2 * Hp:3 * Hp] + b_hh_n))
        h_new = n + z * (h - n)
        if needs_mask:
            # last chunk may contain zero-padded timesteps; keep h frozen there
            m = ((c * Tc + t) < T_total).astype(h.dtype)
            h = h + m * (h_new - h)
        else:
            h = h_new
    h_ref[...] = h

    @pl.when(c == pl.num_programs(0) - 1)
    def _():
        out_ref[...] = (jnp.dot(h, w_fc_ref[...],
                                preferred_element_type=jnp.float32)
                        + b_fc_ref[...])


def rnn_tracker_forward(x_btd, params, *, chunk_steps=8):
    """x_btd: (B, T, D) float32 (PyTorch batch_first). Returns (B, O)."""
    B, T, D = x_btd.shape
    H = params["w_hh"].shape[0]
    O = params["w_fc"].shape[1]

    Bp = _round_up(max(B, 8), 8)          # full sublane group
    Hp = _round_up(max(H, 128), 128)      # each gate owns its own 128-lane block(s)

    Tc = max(1, min(chunk_steps, T))
    num_chunks = -(-T // Tc)
    T_pad = num_chunks * Tc

    # --- per-gate zero padding: (..., 3H) -> (..., 3Hp), gate order r|z|n kept ---
    def pad_gate_cols(w):
        r, z, n = jnp.split(w, 3, axis=-1)
        pad = [(0, 0)] * (w.ndim - 1) + [(0, Hp - H)]
        return jnp.concatenate([jnp.pad(r, pad), jnp.pad(z, pad), jnp.pad(n, pad)],
                               axis=-1)

    w_ih = pad_gate_cols(params["w_ih"]).astype(jnp.bfloat16)                  # (D, 3Hp)
    w_hh = jnp.pad(pad_gate_cols(params["w_hh"]),
                   ((0, Hp - H), (0, 0))).astype(jnp.bfloat16)                 # (Hp, 3Hp)
    b_ih = pad_gate_cols(params["b_ih"])                                       # (1, 3Hp)
    b_hh = pad_gate_cols(params["b_hh"])                                       # (1, 3Hp)
    # fold b_hh of r,z into the staged input projection; keep n-gate b_hh separate
    b_hh_rz = b_hh.at[:, 2 * Hp:].set(0.0)
    gi_bias = b_ih + b_hh_rz                                                   # (1, 3Hp)
    b_hh_n = b_hh[:, 2 * Hp:3 * Hp]                                            # (1, Hp)
    w_fc = jnp.pad(params["w_fc"], ((0, Hp - H), (0, 0)))                      # (Hp, O)
    b_fc = params["b_fc"]                                                      # (1, O)

    # time-major, batch padded to Bp, time padded to full chunks, flattened
    x_tbd = jnp.transpose(x_btd, (1, 0, 2))                                    # (T, B, D)
    x_tbd = jnp.pad(x_tbd, ((0, T_pad - T), (0, Bp - B), (0, 0)))              # (T_pad,Bp,D)
    x_2d = x_tbd.reshape(T_pad * Bp, D)                                        # (T_pad*Bp,D)

    kernel = functools.partial(_gru_chunk_kernel, Tc=Tc, Bp=Bp, Hp=Hp, T_total=T)

    grid_spec = pltpu.PrefetchScalarGridSpec(
        num_scalar_prefetch=0,
        grid=(num_chunks,),
        in_specs=[
            pl.BlockSpec((Tc * Bp, D), lambda c: (c, 0)),      # x: streamed per chunk
            pl.BlockSpec((D, 3 * Hp), lambda c: (0, 0)),       # weights stay resident
            pl.BlockSpec((Hp, 3 * Hp), lambda c: (0, 0)),
            pl.BlockSpec((1, 3 * Hp), lambda c: (0, 0)),
            pl.BlockSpec((1, Hp), lambda c: (0, 0)),
            pl.BlockSpec((Hp, O), lambda c: (0, 0)),
            pl.BlockSpec((1, O), lambda c: (0, 0)),
        ],
        out_specs=pl.BlockSpec((Bp, O), lambda c: (0, 0)),
        scratch_shapes=[pltpu.VMEM((Bp, Hp), jnp.float32)],    # carried hidden state
    )

    out_pad = pl.pallas_call(
        kernel,
        out_shape=jax.ShapeDtypeStruct((Bp, O), jnp.float32),
        grid_spec=grid_spec,
        compiler_params=pltpu.CompilerParams(
            dimension_semantics=("arbitrary",)),               # serial recurrence axis
    )(x_2d, w_ih, w_hh, gi_bias, b_hh_n, w_fc, b_fc)
    return out_pad[:B]


def init_params(key, input_dim, hidden_dim, output_dim):
    """Deterministic init matching PyTorch GRU/Linear default U(-1/sqrt(H), 1/sqrt(H))."""
    ks = jax.random.split(key, 6)
    bound = 1.0 / jnp.sqrt(hidden_dim)

    def u(k, shape):
        return jax.random.uniform(k, shape, jnp.float32, -bound, bound)

    # PyTorch stores weight_ih_l0 as (3H, D); we keep the transposed (D, 3H) layout
    # so the kernel does x @ W.  Gate order: r, z, n.
    return {
        "w_ih": u(ks[0], (input_dim, 3 * hidden_dim)),
        "w_hh": u(ks[1], (hidden_dim, 3 * hidden_dim)),
        "b_ih": u(ks[2], (1, 3 * hidden_dim)),
        "b_hh": u(ks[3], (1, 3 * hidden_dim)),
        "w_fc": u(ks[4], (hidden_dim, output_dim)),
        "b_fc": u(ks[5], (1, output_dim)),
    }


def _reference_forward(x_btd, params, mm_dtype=jnp.float32):
    """Pure-JAX reference of the PyTorch GRU + Linear forward.

    mm_dtype=bf16 mirrors the kernel's MXU operand dtype (f32 accumulation)."""
    B, T, D = x_btd.shape
    H = params["w_hh"].shape[0]

    def mm(a, b):
        return jnp.dot(a.astype(mm_dtype), b.astype(mm_dtype),
                       preferred_element_type=jnp.float32)

    h = jnp.zeros((B, H), jnp.float32)
    for t in range(T):
        gi = mm(x_btd[:, t, :], params["w_ih"]) + params["b_ih"]
        gh = mm(h, params["w_hh"]) + params["b_hh"]
        r = jax.nn.sigmoid(gi[:, :H] + gh[:, :H])
        z = jax.nn.sigmoid(gi[:, H:2 * H] + gh[:, H:2 * H])
        n = jnp.tanh(gi[:, 2 * H:] + r * gh[:, 2 * H:])
        h = (1.0 - z) * n + z * h
    return h @ params["w_fc"] + params["b_fc"]


if __name__ == "__main__":
    # Small shapes implied by the module: batch=2, seq=8, input_dim=4,
    # hidden_dim=32, output_dim=4.
    B, T, D, H, O = 2, 8, 4, 32, 4

    key = jax.random.PRNGKey(0)
    k_x, k_p = jax.random.split(key)
    x = jax.random.normal(k_x, (B, T, D), dtype=jnp.float32)
    params = init_params(k_p, D, H, O)

    # chunk_steps=4 -> 2 grid steps (exercises the carried-h / pipelined-x path)
    out = rnn_tracker_forward(x, params, chunk_steps=4)
    out = jax.block_until_ready(out)
    assert out.shape == (B, O)

    ref_bf16 = _reference_forward(x, params, mm_dtype=jnp.bfloat16)
    ref_f32 = _reference_forward(x, params, mm_dtype=jnp.float32)
    # tight vs a matmul-dtype-matched reference, loose vs the pure-f32 reference
    assert jnp.allclose(out, ref_bf16, atol=2e-3, rtol=2e-3)
    assert jnp.allclose(out, ref_f32, atol=5e-2, rtol=5e-2)

    # also exercise the non-divisible-T remainder masking (3 chunks, last partial)
    out2 = rnn_tracker_forward(x, params, chunk_steps=3)
    out2 = jax.block_until_ready(out2)
    assert jnp.allclose(out2, ref_bf16, atol=2e-3, rtol=2e-3)

    print("KERNEL_OK")
</pallas_src>

<mosaic_0001>
module attributes {stable_mosaic.version = 11 : i64} {
  func.func @_gru_chunk_kernel(%arg0: i32, %arg1: memref<32x4xf32, #tpu.memory_space<vmem>>, %arg2: memref<4x384xbf16, #tpu.memory_space<vmem>>, %arg3: memref<128x384xbf16, #tpu.memory_space<vmem>>, %arg4: memref<1x384xf32, #tpu.memory_space<vmem>>, %arg5: memref<1x128xf32, #tpu.memory_space<vmem>>, %arg6: memref<128x4xf32, #tpu.memory_space<vmem>>, %arg7: memref<1x4xf32, #tpu.memory_space<vmem>>, %arg8: memref<8x4xf32, #tpu.memory_space<vmem>>, %arg9: memref<8x128xf32, #tpu.memory_space<vmem>>) attributes {dimension_semantics = [#tpu.dimension_semantics<arbitrary>], iteration_bounds = array<i64: 2>, scalar_prefetch = 0 : i64, scratch_operands = 1 : i64, tpu.core_type = #tpu.core_type<tc>, window_params = [{transform_indices = @transform_0, window_bounds = array<i64: 32, 4>}, {pipeline_mode = #tpu.pipeline_mode<synchronous>, transform_indices = @transform_1, window_bounds = array<i64: 4, 384>}, {pipeline_mode = #tpu.pipeline_mode<synchronous>, transform_indices = @transform_2, window_bounds = array<i64: 128, 384>}, {pipeline_mode = #tpu.pipeline_mode<synchronous>, transform_indices = @transform_3, window_bounds = array<i64: 1, 384>}, {pipeline_mode = #tpu.pipeline_mode<synchronous>, transform_indices = @transform_4, window_bounds = array<i64: 1, 128>}, {pipeline_mode = #tpu.pipeline_mode<synchronous>, transform_indices = @transform_5, window_bounds = array<i64: 128, 4>}, {pipeline_mode = #tpu.pipeline_mode<synchronous>, transform_indices = @transform_6, window_bounds = array<i64: 1, 4>}, {pipeline_mode = #tpu.pipeline_mode<synchronous>, transform_indices = @transform_7, window_bounds = array<i64: 8, 4>}]} {
    %c0_i32 = arith.constant 0 : i32
    %0 = arith.cmpi eq, %arg0, %c0_i32 : i32
    %1 = arith.extui %0 : i1 to i32
    %c0_i32_0 = arith.constant 0 : i32
    %2 = arith.cmpi ne, %1, %c0_i32_0 : i32
    scf.if %2 {
      %cst_27 = arith.constant 0.000000e+00 : f32
      %131 = vector.broadcast %cst_27 : f32 to vector<8x128xf32>
      %c0_28 = arith.constant 0 : index
      %c0_29 = arith.constant 0 : index
      %132 = vector.load %arg9[%c0_28, %c0_29] : memref<8x128xf32, #tpu.memory_space<vmem>>, vector<8x128xf32>
      tpu.vector_store %arg9[%c0_28, %c0_29], %131 {strides = array<i32>} : memref<8x128xf32, #tpu.memory_space<vmem>>, vector<8x128xf32>,
    } else {
    }
    %c0 = arith.constant 0 : index
    %c0_1 = arith.constant 0 : index
    %3 = vector.load %arg1[%c0, %c0_1] : memref<32x4xf32, #tpu.memory_space<vmem>>, vector<32x4xf32>
    %4 = arith.truncf %3 : vector<32x4xf32> to vector<32x4xbf16>
    %c0_2 = arith.constant 0 : index
    %c0_3 = arith.constant 0 : index
    %5 = vector.load %arg2[%c0_2, %c0_3] : memref<4x384xbf16, #tpu.memory_space<vmem>>, vector<4x384xbf16>
    %cst = arith.constant dense<0.000000e+00> : vector<32x384xf32>
    %6 = tpu.matmul %4, %5, %cst {dimension_numbers = #tpu.dot_dimension_numbers<[1], [0], [0], [1], [0, 0, 1, 1], [], []>} : vector<32x4xbf16>, vector<4x384xbf16>, vector<32x384xf32> -> vector<32x384xf32>
    %c0_4 = arith.constant 0 : index
    %c0_5 = arith.constant 0 : index
    %7 = vector.load %arg4[%c0_4, %c0_5] : memref<1x384xf32, #tpu.memory_space<vmem>>, vector<1x384xf32>
    %8 = vector.broadcast %7 : vector<1x384xf32> to vector<32x384xf32>
    %9 = arith.addf %6, %8 : vector<32x384xf32>
    %c0_6 = arith.constant 0 : index
    %c0_7 = arith.constant 0 : index
    %10 = vector.load %arg3[%c0_6, %c0_7] : memref<128x384xbf16, #tpu.memory_space<vmem>>, vector<128x384xbf16>
    %c0_8 = arith.constant 0 : index
    %c0_9 = arith.constant 0 : index
    %11 = vector.load %arg5[%c0_8, %c0_9] : memref<1x128xf32, #tpu.memory_space<vmem>>, vector<1x128xf32>
    %12 = vector.shape_cast %11 : vector<1x128xf32> to vector<1x128xf32>
    %13 = vector.broadcast %12 : vector<1x128xf32> to vector<8x128xf32>
    %c0_10 = arith.constant 0 : index
    %c0_11 = arith.constant 0 : index
    %14 = vector.load %arg9[%c0_10, %c0_11] : memref<8x128xf32, #tpu.memory_space<vmem>>, vector<8x128xf32>
    %15 = vector.extract_strided_slice %9 {offsets = [0, 0], sizes = [8, 384], strides = [1, 1]} : vector<32x384xf32> to vector<8x384xf32>
    %16 = arith.truncf %14 : vector<8x128xf32> to vector<8x128xbf16>
    %cst_12 = arith.constant dense<0.000000e+00> : vector<8x384xf32>
    %17 = tpu.matmul %16, %10, %cst_12 {dimension_numbers = #tpu.dot_dimension_numbers<[1], [0], [0], [1], [0, 0, 1, 1], [], []>} : vector<8x128xbf16>, vector<128x384xbf16>, vector<8x384xf32> -> vector<8x384xf32>
    %18 = vector.extract_strided_slice %15 {offsets = [0, 0], sizes = [8, 128], strides = [1, 1]} : vector<8x384xf32> to vector<8x128xf32>
    %19 = vector.extract_strided_slice %17 {offsets = [0, 0], sizes = [8, 128], strides = [1, 1]} : vector<8x384xf32> to vector<8x128xf32>
    %20 = arith.addf %18, %19 : vector<8x128xf32>
    %21 = arith.negf %20 : vector<8x128xf32>
    %22 = math.exp %21 : vector<8x128xf32>
    %cst_13 = arith.constant 1.000000e+00 : f32
    %23 = vector.broadcast %cst_13 : f32 to vector<8x128xf32>
    %24 = arith.addf %23, %22 : vector<8x128xf32>
    %25 = arith.divf %23, %24 : vector<8x128xf32>
    %26 = vector.extract_strided_slice %15 {offsets = [0, 128], sizes = [8, 128], strides = [1, 1]} : vector<8x384xf32> to vector<8x128xf32>
    %27 = vector.extract_strided_slice %17 {offsets = [0, 128], sizes = [8, 128], strides = [1, 1]} : vector<8x384xf32> to vector<8x128xf32>
    %28 = arith.addf %26, %27 : vector<8x128xf32>
    %29 = arith.negf %28 : vector<8x128xf32>
    %30 = math.exp %29 : vector<8x128xf32>
    %cst_14 = arith.constant 1.000000e+00 : f32
    %31 = vector.broadcast %cst_14 : f32 to vector<8x128xf32>
    %32 = arith.addf %31, %30 : vector<8x128xf32>
    %33 = arith.divf %31, %32 : vector<8x128xf32>
    %34 = vector.extract_strided_slice %15 {offsets = [0, 256], sizes = [8, 128], strides = [1, 1]} : vector<8x384xf32> to vector<8x128xf32>
    %35 = vector.extract_strided_slice %17 {offsets = [0, 256], sizes = [8, 128], strides = [1, 1]} : vector<8x384xf32> to vector<8x128xf32>
    %36 = arith.addf %35, %13 : vector<8x128xf32>
    %37 = arith.mulf %25, %36 : vector<8x128xf32>
    %38 = arith.addf %34, %37 : vector<8x128xf32>
    %39 = math.tanh %38 : vector<8x128xf32>
    %40 = arith.subf %14, %39 : vector<8x128xf32>
    %41 = arith.mulf %33, %40 : vector<8x128xf32>
    %42 = arith.addf %39, %41 : vector<8x128xf32>
    %43 = vector.extract_strided_slice %9 {offsets = [8, 0], sizes = [8, 384], strides = [1, 1]} : vector<32x384xf32> to vector<8x384xf32>
    %44 = arith.truncf %42 : vector<8x128xf32> to vector<8x128xbf16>
    %cst_15 = arith.constant dense<0.000000e+00> : vector<8x384xf32>
    %45 = tpu.matmul %44, %10, %cst_15 {dimension_numbers = #tpu.dot_dimension_numbers<[1], [0], [0], [1], [0, 0, 1, 1], [], []>} : vector<8x128xbf16>, vector<128x384xbf16>, vector<8x384xf32> -> vector<8x384xf32>
    %46 = vector.extract_strided_slice %43 {offsets = [0, 0], sizes = [8, 128], strides = [1, 1]} : vector<8x384xf32> to vector<8x128xf32>
    %47 = vector.extract_strided_slice %45 {offsets = [0, 0], sizes = [8, 128], strides = [1, 1]} : vector<8x384xf32> to vector<8x128xf32>
    %48 = arith.addf %46, %47 : vector<8x128xf32>
    %49 = arith.negf %48 : vector<8x128xf32>
    %50 = math.exp %49 : vector<8x128xf32>
    %cst_16 = arith.constant 1.000000e+00 : f32
    %51 = vector.broadcast %cst_16 : f32 to vector<8x128xf32>
    %52 = arith.addf %51, %50 : vector<8x128xf32>
    %53 = arith.divf %51, %52 : vector<8x128xf32>
    %54 = vector.extract_strided_slice %43 {offsets = [0, 128], sizes = [8, 128], strides = [1, 1]} : vector<8x384xf32> to vector<8x128xf32>
    %55 = vector.extract_strided_slice %45 {offsets = [0, 128], sizes = [8, 128], strides = [1, 1]} : vector<8x384xf32> to vector<8x128xf32>
    %56 = arith.addf %54, %55 : vector<8x128xf32>
    %57 = arith.negf %56 : vector<8x128xf32>
    %58 = math.exp %57 : vector<8x128xf32>
    %cst_17 = arith.constant 1.000000e+00 : f32
    %59 = vector.broadcast %cst_17 : f32 to vector<8x128xf32>
    %60 = arith.addf %59, %58 : vector<8x128xf32>
    %61 = arith.divf %59, %60 : vector<8x128xf32>
    %62 = vector.extract_strided_slice %43 {offsets = [0, 256], sizes = [8, 128], strides = [1, 1]} : vector<8x384xf32> to vector<8x128xf32>
    %63 = vector.extract_strided_slice %45 {offsets = [0, 256], sizes = [8, 128], strides = [1, 1]} : vector<8x384xf32> to vector<8x128xf32>
    %64 = arith.addf %63, %13 : vector<8x128xf32>
    %65 = arith.mulf %53, %64 : vector<8x128xf32>
    %66 = arith.addf %62, %65 : vector<8x128xf32>
    %67 = math.tanh %66 : vector<8x128xf32>
    %68 = arith.subf %42, %67 : vector<8x128xf32>
    %69 = arith.mulf %61, %68 : vector<8x128xf32>
    %70 = arith.addf %67, %69 : vector<8x128xf32>
    %71 = vector.extract_strided_slice %9 {offsets = [16, 0], sizes = [8, 384], strides = [1, 1]} : vector<32x384xf32> to vector<8x384xf32>
    %72 = arith.truncf %70 : vector<8x128xf32> to vector<8x128xbf16>
    %cst_18 = arith.constant dense<0.000000e+00> : vector<8x384xf32>
    %73 = tpu.matmul %72, %10, %cst_18 {dimension_numbers = #tpu.dot_dimension_numbers<[1], [0], [0], [1], [0, 0, 1, 1], [], []>} : vector<8x128xbf16>, vector<128x384xbf16>, vector<8x384xf32> -> vector<8x384xf32>
    %74 = vector.extract_strided_slice %71 {offsets = [0, 0], sizes = [8, 128], strides = [1, 1]} : vector<8x384xf32> to vector<8x128xf32>
    %75 = vector.extract_strided_slice %73 {offsets = [0, 0], sizes = [8, 128], strides = [1, 1]} : vector<8x384xf32> to vector<8x128xf32>
    %76 = arith.addf %74, %75 : vector<8x128xf32>
    %77 = arith.negf %76 : vector<8x128xf32>
    %78 = math.exp %77 : vector<8x128xf32>
    %cst_19 = arith.constant 1.000000e+00 : f32
    %79 = vector.broadcast %cst_19 : f32 to vector<8x128xf32>
    %80 = arith.addf %79, %78 : vector<8x128xf32>
    %81 = arith.divf %79, %80 : vector<8x128xf32>
    %82 = vector.extract_strided_slice %71 {offsets = [0, 128], sizes = [8, 128], strides = [1, 1]} : vector<8x384xf32> to vector<8x128xf32>
    %83 = vector.extract_strided_slice %73 {offsets = [0, 128], sizes = [8, 128], strides = [1, 1]} : vector<8x384xf32> to vector<8x128xf32>
    %84 = arith.addf %82, %83 : vector<8x128xf32>
    %85 = arith.negf %84 : vector<8x128xf32>
    %86 = math.exp %85 : vector<8x128xf32>
    %cst_20 = arith.constant 1.000000e+00 : f32
    %87 = vector.broadcast %cst_20 : f32 to vector<8x128xf32>
    %88 = arith.addf %87, %86 : vector<8x128xf32>
    %89 = arith.divf %87, %88 : vector<8x128xf32>
    %90 = vector.extract_strided_slice %71 {offsets = [0, 256], sizes = [8, 128], strides = [1, 1]} : vector<8x384xf32> to vector<8x128xf32>
    %91 = vector.extract_strided_slice %73 {offsets = [0, 256], sizes = [8, 128], strides = [1, 1]} : vector<8x384xf32> to vector<8x128xf32>
    %92 = arith.addf %91, %13 : vector<8x128xf32>
    %93 = arith.mulf %81, %92 : vector<8x128xf32>
    %94 = arith.addf %90, %93 : vector<8x128xf32>
    %95 = math.tanh %94 : vector<8x128xf32>
    %96 = arith.subf %70, %95 : vector<8x128xf32>
    %97 = arith.mulf %89, %96 : vector<8x128xf32>
    %98 = arith.addf %95, %97 : vector<8x128xf32>
    %99 = vector.extract_strided_slice %9 {offsets = [24, 0], sizes = [8, 384], strides = [1, 1]} : vector<32x384xf32> to vector<8x384xf32>
    %100 = arith.truncf %98 : vector<8x128xf32> to vector<8x128xbf16>
    %cst_21 = arith.constant dense<0.000000e+00> : vector<8x384xf32>
    %101 = tpu.matmul %100, %10, %cst_21 {dimension_numbers = #tpu.dot_dimension_numbers<[1], [0], [0], [1], [0, 0, 1, 1], [], []>} : vector<8x128xbf16>, vector<128x384xbf16>, vector<8x384xf32> -> vector<8x384xf32>
    %102 = vector.extract_strided_slice %99 {offsets = [0, 0], sizes = [8, 128], strides = [1, 1]} : vector<8x384xf32> to vector<8x128xf32>
    %103 = vector.extract_strided_slice %101 {offsets = [0, 0], sizes = [8, 128], strides = [1, 1]} : vector<8x384xf32> to vector<8x128xf32>
    %104 = arith.addf %102, %103 : vector<8x128xf32>
    %105 = arith.negf %104 : vector<8x128xf32>
    %106 = math.exp %105 : vector<8x128xf32>
    %cst_22 = arith.constant 1.000000e+00 : f32
    %107 = vector.broadcast %cst_22 : f32 to vector<8x128xf32>
    %108 = arith.addf %107, %106 : vector<8x128xf32>
    %109 = arith.divf %107, %108 : vector<8x128xf32>
    %110 = vector.extract_strided_slice %99 {offsets = [0, 128], sizes = [8, 128], strides = [1, 1]} : vector<8x384xf32> to vector<8x128xf32>
    %111 = vector.extract_strided_slice %101 {offsets = [0, 128], sizes = [8, 128], strides = [1, 1]} : vector<8x384xf32> to vector<8x128xf32>
    %112 = arith.addf %110, %111 : vector<8x128xf32>
    %113 = arith.negf %112 : vector<8x128xf32>
    %114 = math.exp %113 : vector<8x128xf32>
    %cst_23 = arith.constant 1.000000e+00 : f32
    %115 = vector.broadcast %cst_23 : f32 to vector<8x128xf32>
    %116 = arith.addf %115, %114 : vector<8x128xf32>
    %117 = arith.divf %115, %116 : vector<8x128xf32>
    %118 = vector.extract_strided_slice %99 {offsets = [0, 256], sizes = [8, 128], strides = [1, 1]} : vector<8x384xf32> to vector<8x128xf32>
    %119 = vector.extract_strided_slice %101 {offsets = [0, 256], sizes = [8, 128], strides = [1, 1]} : vector<8x384xf32> to vector<8x128xf32>
    %120 = arith.addf %119, %13 : vector<8x128xf32>
    %121 = arith.mulf %109, %120 : vector<8x128xf32>
    %122 = arith.addf %118, %121 : vector<8x128xf32>
    %123 = math.tanh %122 : vector<8x128xf32>
    %124 = arith.subf %98, %123 : vector<8x128xf32>
    %125 = arith.mulf %117, %124 : vector<8x128xf32>
    %126 = arith.addf %123, %125 : vector<8x128xf32>
    %c0_24 = arith.constant 0 : index
    %c0_25 = arith.constant 0 : index
    %127 = vector.load %arg9[%c0_24, %c0_25] : memref<8x128xf32, #tpu.memory_space<vmem>>, vector<8x128xf32>
    tpu.vector_store %arg9[%c0_24, %c0_25], %126 {strides = array<i32>} : memref<8x128xf32, #tpu.memory_space<vmem>>, vector<8x128xf32>,
    %c1_i32 = arith.constant 1 : i32
    %128 = arith.cmpi eq, %arg0, %c1_i32 : i32
    %129 = arith.extui %128 : i1 to i32
    %c0_i32_26 = arith.constant 0 : i32
    %130 = arith.cmpi ne, %129, %c0_i32_26 : i32
    scf.if %130 {
      %c0_27 = arith.constant 0 : index
      %c0_28 = arith.constant 0 : index
      %131 = vector.load %arg6[%c0_27, %c0_28] : memref<128x4xf32, #tpu.memory_space<vmem>>, vector<128x4xf32>
      %cst_29 = arith.constant dense<0.000000e+00> : vector<8x4xf32>
      %132 = tpu.matmul %126, %131, %cst_29 {dimension_numbers = #tpu.dot_dimension_numbers<[1], [0], [0], [1], [0, 0, 1, 1], [], []>} : vector<8x128xf32>, vector<128x4xf32>, vector<8x4xf32> -> vector<8x4xf32>
      %c0_30 = arith.constant 0 : index
      %c0_31 = arith.constant 0 : index
      %133 = vector.load %arg7[%c0_30, %c0_31] : memref<1x4xf32, #tpu.memory_space<vmem>>, vector<1x4xf32>
      %134 = vector.broadcast %133 : vector<1x4xf32> to vector<8x4xf32>
      %135 = arith.addf %132, %134 : vector<8x4xf32>
      %c0_32 = arith.constant 0 : index
      %c0_33 = arith.constant 0 : index
      %136 = vector.load %arg8[%c0_32, %c0_33] : memref<8x4xf32, #tpu.memory_space<vmem>>, vector<8x4xf32>
      tpu.vector_store %arg8[%c0_32, %c0_33], %135 {strides = array<i32>} : memref<8x4xf32, #tpu.memory_space<vmem>>, vector<8x4xf32>,
    } else {
    }
    return
  }
  func.func @transform_0(%arg0: i32) -> (i32, i32) {
    %c0_i32 = arith.constant 0 : i32
    %c0_i32_0 = arith.constant 0 : i32
    return %arg0, %c0_i32 : i32, i32
  }
  func.func @transform_1(%arg0: i32) -> (i32, i32) {
    %c0_i32 = arith.constant 0 : i32
    %c0_i32_0 = arith.constant 0 : i32
    %c0_i32_1 = arith.constant 0 : i32
    return %c0_i32, %c0_i32_0 : i32, i32
  }
  func.func @transform_2(%arg0: i32) -> (i32, i32) {
    %c0_i32 = arith.constant 0 : i32
    %c0_i32_0 = arith.constant 0 : i32
    %c0_i32_1 = arith.constant 0 : i32
    return %c0_i32, %c0_i32_0 : i32, i32
  }
  func.func @transform_3(%arg0: i32) -> (i32, i32) {
    %c0_i32 = arith.constant 0 : i32
    %c0_i32_0 = arith.constant 0 : i32
    %c0_i32_1 = arith.constant 0 : i32
    return %c0_i32, %c0_i32_0 : i32, i32
  }
  func.func @transform_4(%arg0: i32) -> (i32, i32) {
    %c0_i32 = arith.constant 0 : i32
    %c0_i32_0 = arith.constant 0 : i32
    %c0_i32_1 = arith.constant 0 : i32
    return %c0_i32, %c0_i32_0 : i32, i32
  }
  func.func @transform_5(%arg0: i32) -> (i32, i32) {
    %c0_i32 = arith.constant 0 : i32
    %c0_i32_0 = arith.constant 0 : i32
    %c0_i32_1 = arith.constant 0 : i32
    return %c0_i32, %c0_i32_0 : i32, i32
  }
  func.func @transform_6(%arg0: i32) -> (i32, i32) {
    %c0_i32 = arith.constant 0 : i32
    %c0_i32_0 = arith.constant 0 : i32
    %c0_i32_1 = arith.constant 0 : i32
    return %c0_i32, %c0_i32_0 : i32, i32
  }
  func.func @transform_7(%arg0: i32) -> (i32, i32) {
    %c0_i32 = arith.constant 0 : i32
    %c0_i32_0 = arith.constant 0 : i32
    %c0_i32_1 = arith.constant 0 : i32
    return %c0_i32, %c0_i32_0 : i32, i32
  }
}

</mosaic_0001>

<llo_original>
// kernel: tpu_custom_call.1
$region0: #{tpu_custom_call.1}
  #allocation0 [shape = 'u32[]', space=smem, size = 0x4, offset = 0x4, fixed_abs, tag = 'smem constant byte address 0x4 - core index']
  #allocation1 [shape = 'u32[72,128]{1,0:T(1,128)}', space=vmem, size = 0x9000, scoped, tag = 'internal scratch']
  #allocation2 [shape = 'f32[8,128]{1,0:T(8,128)}', space=vmem, size = 0x1000, scoped, tag = 'scratch operand']
  %s0 = inlined_call_operand.vmem [shape: f32[64,4], index: 0, kind: input, shape index: {}]
  %s1 = inlined_call_operand.hbm [shape: bf16[4,384], index: 1, kind: input, shape index: {}]
  %s2 = inlined_call_operand.vmem [shape: bf16[128,384], index: 2, kind: input, shape index: {}]
  %s3 = inlined_call_operand.vmem [shape: f32[1,384], index: 3, kind: input, shape index: {}]
  %s4 = inlined_call_operand.vmem [shape: f32[1,128], index: 4, kind: input, shape index: {}]
  %s5 = inlined_call_operand.vmem [shape: f32[128,4], index: 5, kind: input, shape index: {}]
  %s6 = inlined_call_operand.vmem [shape: f32[1,4], index: 6, kind: input, shape index: {}]
  %s7 = inlined_call_operand.vmem [shape: f32[8,4], index: 7, kind: output, shape index: {}]
  %s8 = sld [smem:[#allocation0]]
  $region73: #{tpu_custom_call.1} parent=0
    _
  %s10 = ssub.s32 1, %s8
  %s11 = scalar_select 0, %s10, %s8
  $region1: #{tpu_custom_call.1} parent=0
    #allocation3 [shape = 'u8[3072]{0}', space=vmem, size = 0xc00, scoped, tag = 'input window, operand 1, single buffered']
    #allocation4 [shape = 's32[2]{0}', space=sflag, size = 0x8, scoped, tag = 'scoped memory for tpu_custom_call.1']
    %12 = vsyncpa [#allocation4], 0
    loop: start=0, step=1, limit=4
    $region2: #{tpu_custom_call.1} parent=1 // loop_pre_header
      _
    $region3: #{tpu_custom_call.1} parent=1 // loop_header
      %s14 = sphi 0, %s18
      %p15 = scmp.ge.s32.totalorder %s14, 4
      %s24 = sphi 0, %s26
      %s27 = sphi 0, %s24
      %s28 = sphi 0, %s27
      %s44 = sphi 0, %s28
      %s48 = sphi 0, %s48
      %s50 = sphi 0, %s48
      %s51 = sphi 0, %s50
      %s65 = sphi 0, %s51
      %s69 = sphi 0, %s69
      %s71 = sphi 0, %s69
      %s72 = sphi 0, %s71
      %s86 = sphi 0, %s72
      %s90 = sphi 0, %s90
      %s92 = sphi 0, %s90
      %s93 = sphi 0, %s92
      %s107 = sphi 0, %s93
      %s111 = sphi 0, %s111
      %s113 = sphi 0, %s111
      %s114 = sphi 0, %s113
      %s128 = sphi 0, %s114
      %s132 = sphi 0, %s132
      %s134 = sphi 0, %s132
      %s135 = sphi 0, %s134
      %s149 = sphi 0, %s135
      %s153 = sphi 0, %s153
      %s155 = sphi 0, %s153
      %s156 = sphi 0, %s155
      %s170 = sphi 0, %s156
      %s174 = sphi 0, %s174
      %s176 = sphi 0, %s174
      %s177 = sphi 0, %s176
      %s191 = sphi 0, %s177
    $region4: #{tpu_custom_call.1} parent=1 // loop_header_branch
      %17 = sbr.rel (%p15) target = $region8
    $region5: #{tpu_custom_call.1} parent=1 // loop_body
      %s19 = ssub.s32 %s14, 1
      %s20 = ssub.s32 %s14, 2
      %s21 = sadd.s32 %s14, 1
      %s22 = ssub.s32 %s14, %s21
      %p23 = scmp.eq.s32.totalorder %s22, 0
      %s25 = sadd.s32 %s24, 1
      %s26 = scalar_select %p23, %s24, %s25
      %p29 = pneg %p23
      %p30 = scmp.eq.s32.totalorder %s14, 1
      %p31 = por %p29, %p30
      %p32 = scmp.ne.s32.totalorder %s24, %s27
      %p33 = scmp.eq.s32.totalorder %s14, 0
      %p34 = por %p32, %p33
      %p35 = scmp.ne.s32.totalorder %s24, %s27
      %p36 = scmp.eq.s32.totalorder %s19, 1
      %p37 = por %p35, %p36
      %p38 = scmp.ne.s32.totalorder %s27, %s28
      %p39 = scmp.eq.s32.totalorder %s19, 0
      %p40 = por %p38, %p39
      %p41 = scmp.ne.s32.totalorder %s27, %s28
      %p42 = scmp.eq.s32.totalorder %s20, 1
      %p43 = por %p41, %p42
      %p45 = scmp.ne.s32.totalorder %s28, %s44
      %p46 = scmp.eq.s32.totalorder %s20, 0
      %p47 = por %p45, %p46
      %s49 = sadd.s32 %s48, 1
      %p52 = scmp.eq.s32.totalorder %s14, 1
      %p53 = scmp.ne.s32.totalorder %s48, %s50
      %p54 = scmp.eq.s32.totalorder %s14, 0
      %p55 = por %p53, %p54
      %p56 = scmp.ne.s32.totalorder %s48, %s50
      %p57 = scmp.eq.s32.totalorder %s19, 1
      %p58 = por %p56, %p57
      %p59 = scmp.ne.s32.totalorder %s50, %s51
      %p60 = scmp.eq.s32.totalorder %s19, 0
      %p61 = por %p59, %p60
      %p62 = scmp.ne.s32.totalorder %s50, %s51
      %p63 = scmp.eq.s32.totalorder %s20, 1
      %p64 = por %p62, %p63
      %p66 = scmp.ne.s32.totalorder %s51, %s65
      %p67 = scmp.eq.s32.totalorder %s20, 0
      %p68 = por %p66, %p67
      %s70 = sadd.s32 %s69, 1
      %p73 = scmp.eq.s32.totalorder %s14, 1
      %p74 = scmp.ne.s32.totalorder %s69, %s71
      %p75 = scmp.eq.s32.totalorder %s14, 0
      %p76 = por %p74, %p75
      %p77 = scmp.ne.s32.totalorder %s69, %s71
      %p78 = scmp.eq.s32.totalorder %s19, 1
      %p79 = por %p77, %p78
      %p80 = scmp.ne.s32.totalorder %s71, %s72
      %p81 = scmp.eq.s32.totalorder %s19, 0
      %p82 = por %p80, %p81
      %p83 = scmp.ne.s32.totalorder %s71, %s72
      %p84 = scmp.eq.s32.totalorder %s20, 1
      %p85 = por %p83, %p84
      %p87 = scmp.ne.s32.totalorder %s72, %s86
      %p88 = scmp.eq.s32.totalorder %s20, 0
      %p89 = por %p87, %p88
      %s91 = sadd.s32 %s90, 1
      %p94 = scmp.eq.s32.totalorder %s14, 1
      %p95 = scmp.ne.s32.totalorder %s90, %s92
      %p96 = scmp.eq.s32.totalorder %s14, 0
      %p97 = por %p95, %p96
      %p98 = scmp.ne.s32.totalorder %s90, %s92
      %p99 = scmp.eq.s32.totalorder %s19, 1
      %p100 = por %p98, %p99
      %p101 = scmp.ne.s32.totalorder %s92, %s93
      %p102 = scmp.eq.s32.totalorder %s19, 0
      %p103 = por %p101, %p102
      %p104 = scmp.ne.s32.totalorder %s92, %s93
      %p105 = scmp.eq.s32.totalorder %s20, 1
      %p106 = por %p104, %p105
      %p108 = scmp.ne.s32.totalorder %s93, %s107
      %p109 = scmp.eq.s32.totalorder %s20, 0
      %p110 = por %p108, %p109
      %s112 = sadd.s32 %s111, 1
      %p115 = scmp.eq.s32.totalorder %s14, 1
      %p116 = scmp.ne.s32.totalorder %s111, %s113
      %p117 = scmp.eq.s32.totalorder %s14, 0
      %p118 = por %p116, %p117
      %p119 = scmp.ne.s32.totalorder %s111, %s113
      %p120 = scmp.eq.s32.totalorder %s19, 1
      %p121 = por %p119, %p120
      %p122 = scmp.ne.s32.totalorder %s113, %s114
      %p123 = scmp.eq.s32.totalorder %s19, 0
      %p124 = por %p122, %p123
      %p125 = scmp.ne.s32.totalorder %s113, %s114
      %p126 = scmp.eq.s32.totalorder %s20, 1
      %p127 = por %p125, %p126
      %p129 = scmp.ne.s32.totalorder %s114, %s128
      %p130 = scmp.eq.s32.totalorder %s20, 0
      %p131 = por %p129, %p130
      %s133 = sadd.s32 %s132, 1
      %p136 = scmp.eq.s32.totalorder %s14, 1
      %p137 = scmp.ne.s32.totalorder %s132, %s134
      %p138 = scmp.eq.s32.totalorder %s14, 0
      %p139 = por %p137, %p138
      %p140 = scmp.ne.s32.totalorder %s132, %s134
      %p141 = scmp.eq.s32.totalorder %s19, 1
      %p142 = por %p140, %p141
      %p143 = scmp.ne.s32.totalorder %s134, %s135
      %p144 = scmp.eq.s32.totalorder %s19, 0
      %p145 = por %p143, %p144
      %p146 = scmp.ne.s32.totalorder %s134, %s135
      %p147 = scmp.eq.s32.totalorder %s20, 1
      %p148 = por %p146, %p147
      %p150 = scmp.ne.s32.totalorder %s135, %s149
      %p151 = scmp.eq.s32.totalorder %s20, 0
      %p152 = por %p150, %p151
      %s154 = sadd.s32 %s153, 1
      %p157 = scmp.eq.s32.totalorder %s14, 1
      %p158 = scmp.ne.s32.totalorder %s153, %s155
      %p159 = scmp.eq.s32.totalorder %s14, 0
      %p160 = por %p158, %p159
      %p161 = scmp.ne.s32.totalorder %s153, %s155
      %p162 = scmp.eq.s32.totalorder %s19, 1
      %p163 = por %p161, %p162
      %p164 = scmp.ne.s32.totalorder %s155, %s156
      %p165 = scmp.eq.s32.totalorder %s19, 0
      %p166 = por %p164, %p165
      %p167 = scmp.ne.s32.totalorder %s155, %s156
      %p168 = scmp.eq.s32.totalorder %s20, 1
      %p169 = por %p167, %p168
      %p171 = scmp.ne.s32.totalorder %s156, %s170
      %p172 = scmp.eq.s32.totalorder %s20, 0
      %p173 = por %p171, %p172
      %s175 = sadd.s32 %s174, 1
      %p178 = scmp.eq.s32.totalorder %s14, 1
      %p179 = scmp.ne.s32.totalorder %s174, %s176
      %p180 = scmp.eq.s32.totalorder %s14, 0
      %p181 = por %p179, %p180
      %p182 = scmp.ne.s32.totalorder %s174, %s176
      %p183 = scmp.eq.s32.totalorder %s19, 1
      %p184 = por %p182, %p183
      %p185 = scmp.ne.s32.totalorder %s176, %s177
      %p186 = scmp.eq.s32.totalorder %s19, 0
      %p187 = por %p185, %p186
      %p188 = scmp.ne.s32.totalorder %s176, %s177
      %p189 = scmp.eq.s32.totalorder %s20, 1
      %p190 = por %p188, %p189
      %p192 = scmp.ne.s32.totalorder %s177, %s191
      %p193 = scmp.eq.s32.totalorder %s20, 0
      %p194 = por %p192, %p193
      %p195 = scmp.le.s32.totalorder 1, %s14
      %p196 = scmp.lt.s32.totalorder %s14, 3
      %p197 = pnand %p195, %p196
      %p198 = pneg %p197
      // Predicated region
      $region9: #{tpu_custom_call.1} parent=5 // pred_check
        _
      $region10: #{tpu_custom_call.1} parent=5 // pred_check_branch
        %200 = sbr.rel (%p197) target = $region12
      $region11: #{tpu_custom_call.1} parent=5 // pred_region
        %s201 = ssub.s32 %s14, 1
        // Predicated region
        $region13: #{tpu_custom_call.1} parent=11 // pred_check
          %p202 = pneg %p61
        $region14: #{tpu_custom_call.1} parent=11 // pred_check_branch
          %204 = sbr.rel (%p202) target = $region16
        $region15: #{tpu_custom_call.1} parent=11 // pred_region
          %206 = vsyncadd [#allocation4], 0
          %s208 = sshll.u32 %s1, 4
          %s209 = int_to_ptr.hbm [resolvable:$true] %s208
          %s210 = sshll.u32 [#allocation3], 4
          %s211 = int_to_ptr.vmem [resolvable:$true] %s210
          %213 = dma.hbm_to_vmem [thread:$0]  %s209, 96, %s211, [#allocation4]
        $region16: #{tpu_custom_call.1} parent=11 // pred_fallthru
          _
        // Predicated region
        $region17: #{tpu_custom_call.1} parent=11 // pred_check
          %p214 = pneg %p82
        $region18: #{tpu_custom_call.1} parent=11 // pred_check_branch
          %216 = sbr.rel (%p214) target = $region20
        $region19: #{tpu_custom_call.1} parent=11 // pred_region
          _
        $region20: #{tpu_custom_call.1} parent=11 // pred_fallthru
          _
        // Predicated region
        $region21: #{tpu_custom_call.1} parent=11 // pred_check
          %p217 = pneg %p103
        $region22: #{tpu_custom_call.1} parent=11 // pred_check_branch
          %219 = sbr.rel (%p217) target = $region24
        $region23: #{tpu_custom_call.1} parent=11 // pred_region
          _
        $region24: #{tpu_custom_call.1} parent=11 // pred_fallthru
          _
        // Predicated region
        $region25: #{tpu_custom_call.1} parent=11 // pred_check
          %p220 = pneg %p124
        $region26: #{tpu_custom_call.1} parent=11 // pred_check_branch
          %222 = sbr.rel (%p220) target = $region28
        $region27: #{tpu_custom_call.1} parent=11 // pred_region
          _
        $region28: #{tpu_custom_call.1} parent=11 // pred_fallthru
          _
        // Predicated region
        $region29: #{tpu_custom_call.1} parent=11 // pred_check
          %p223 = pneg %p145
        $region30: #{tpu_custom_call.1} parent=11 // pred_check_branch
          %225 = sbr.rel (%p223) target = $region32
        $region31: #{tpu_custom_call.1} parent=11 // pred_region
          _
        $region32: #{tpu_custom_call.1} parent=11 // pred_fallthru
          _
        // Predicated region
        $region33: #{tpu_custom_call.1} parent=11 // pred_check
          %p226 = pneg %p166
        $region34: #{tpu_custom_call.1} parent=11 // pred_check_branch
          %228 = sbr.rel (%p226) target = $region36
        $region35: #{tpu_custom_call.1} parent=11 // pred_region
          _
        $region36: #{tpu_custom_call.1} parent=11 // pred_fallthru
          _
      $region12: #{tpu_custom_call.1} parent=5 // pred_fallthru
        _
      %p229 = scmp.lt.s32.totalorder %s14, 2
      // Predicated region
      $region37: #{tpu_custom_call.1} parent=5 // pred_check
        %p230 = pneg %p229
      $region38: #{tpu_custom_call.1} parent=5 // pred_check_branch
        %232 = sbr.rel (%p230) target = $region40
      $region39: #{tpu_custom_call.1} parent=5 // pred_region
        // Predicated region
        $region41: #{tpu_custom_call.1} parent=39 // pred_check
          %p233 = pneg %p34
        $region42: #{tpu_custom_call.1} parent=39 // pred_check_branch
          %235 = sbr.rel (%p233) target = $region44
        $region43: #{tpu_custom_call.1} parent=39 // pred_region
          %s236 = smul.u32 4, %s14
          %p237 = scmp.lt.s32.totalorder %s236, 7
          %s238 = scalar_select %p237, %s236, 7
          %s239 = smul.addr %s238, 8
          %s240 = scalar_lea.vmem %s0, %s239
          %s241 = smul.u32 4, %s14
        $region44: #{tpu_custom_call.1} parent=39 // pred_fallthru
          _
      $region40: #{tpu_custom_call.1} parent=5 // pred_fallthru
        _
      %p242 = scmp.le.s32.totalorder 1, %s14
      %p243 = scmp.lt.s32.totalorder %s14, 3
      %p244 = pnand %p242, %p243
      %p245 = pneg %p244
      // Predicated region
      $region45: #{tpu_custom_call.1} parent=5 // pred_check
        _
      $region46: #{tpu_custom_call.1} parent=5 // pred_check_branch
        %247 = sbr.rel (%p244) target = $region48
      $region47: #{tpu_custom_call.1} parent=5 // pred_region
        %s248 = ssub.s32 %s14, 1
        // Predicated region
        $region49: #{tpu_custom_call.1} parent=47 // pred_check
          %p249 = pneg %p61
        $region50: #{tpu_custom_call.1} parent=47 // pred_check_branch
          %251 = sbr.rel (%p249) target = $region52
        $region51: #{tpu_custom_call.1} parent=47 // pred_region
          %253 = dma.done [#allocation4], 96
        $region52: #{tpu_custom_call.1} parent=47 // pred_fallthru
          _
        %s254 = smul.u32 4, %s19
        %p255 = scmp.lt.s32.totalorder %s254, 7
        %s256 = scalar_select %p255, %s254, 7
        %s257 = smul.addr %s256, 8
        %s258 = scalar_lea.vmem %s0, %s257
        %p259 = pneg %p40
        %p260 = pneg %p37
        %p261 = pneg %p61
        %p262 = pneg %p58
        %p263 = pneg %p82
        %p264 = pneg %p79
        %p265 = pneg %p103
        %p266 = pneg %p100
        %p267 = pneg %p124
        %p268 = pneg %p121
        %p269 = pneg %p145
        %p270 = pneg %p142
        %p271 = pneg %p166
        %p272 = pneg %p163
        %p273 = pneg %p187
        %p274 = pneg %p184
        %s275 = smul.u32 4, %s19
        %p276 = scmp.lt.s32.totalorder %s275, 7
        %s277 = scalar_select %p276, %s275, 7
        %s278 = smul.addr %s277, 8
        %s279 = scalar_lea.vmem %s0, %s278
        %s280 = smul.u32 4, %s19
        %p282 = scmp.eq.s32.totalorder %s19, 0
        // Predicated region
        $region53: #{tpu_custom_call.1} parent=47 // pred_check
          %p283 = pneg %p282
        $region54: #{tpu_custom_call.1} parent=47 // pred_check_branch
          %285 = sbr.rel (%p283) target = $region56
        $region55: #{tpu_custom_call.1} parent=47 // pred_region
          %286 = vst [vmem:[#allocation2] sm:$0xff] 0.0
        $region56: #{tpu_custom_call.1} parent=47 // pred_fallthru
          _
        %v287 = vld [vmem:[%s279] sm:$0xff]
        %v288 = vld [vmem:[%s279 + $0x8] sm:$0xff]
        %v289 = vld [vmem:[%s279 + $0x10] sm:$0xff]
        %v290 = vld [vmem:[%s279 + $0x18] sm:$0xff]
        %v291 = vpack.c.bf16 %v288, %v287
        %v292 = vpack.c.bf16 %v290, %v289
        %v293 = vld [vmem:[#allocation3] sm:$0x3f]
        %v294 = vld [vmem:[%s3] sm:$0x7]
        %v296 = vperm.slane %v294, 0
        %v297 = vperm.slane %v294, 1
        %v298 = vperm.slane %v294, 2
        %303 = vst [vmem:[#allocation1] ss:$4 sm:$0xff] %v293
        %v304 = vld.sshfl [vmem:[#allocation1] sm:$0xff pattern:$0x73625140]
        %v305 = vld.sshfl [vmem:[#allocation1 + $0x8] sm:$0xff pattern:$0x73625140]
        %v306 = vld.sshfl [vmem:[#allocation1 + $0x10] sm:$0xff pattern:$0x73625140]
        %vm307 = vcmask 31744
        %v309 = vsel %vm307, %v291, 0
        %v312 = vsel %vm307, %v292, 0
        %vm314 = vcmask 1041408
        %v315 = vsel %vm314, %v304, 0
        %v317 = vsel %vm314, %v305, 0
        %v319 = vsel %vm314, %v306, 0
        %321 = vmatpush.bf16.msra.mxu0 0
        %322 = vmatpush.bf16.msra.mxu0 0
        %323 = vmatpush.bf16.msra.mxu0 0
        %324 = vmatpush.bf16.msra.mxu0 0
        %325 = vmatpush.bf16.msra.mxu0 0
        %326 = vmatpush.bf16.msra.mxu0 0
        %327 = vmatpush.bf16.msra.mxu0 0
        %328 = vmatpush.bf16.msra.mxu0 %v315
        %329 = vmatmul.bf16.gmra.mxu0 %v309
        %v330 = vpop.f32.mrf.mxu0
        %v331 = vadd.f32 %v296, %v330
        %v332 = vpop.f32.mrf.mxu0
        %v333 = vadd.f32 %v296, %v332
        %334 = vmatmul.bf16.gmra.mxu0 %v312
        %v335 = vpop.f32.mrf.mxu0
        %v336 = vadd.f32 %v296, %v335
        %v337 = vpop.f32.mrf.mxu0
        %v338 = vadd.f32 %v296, %v337
        %339 = vdwg.mxu0
        %340 = vmatpush.bf16.msra.mxu0 0
        %341 = vmatpush.bf16.msra.mxu0 0
        %342 = vmatpush.bf16.msra.mxu0 0
        %343 = vmatpush.bf16.msra.mxu0 0
        %344 = vmatpush.bf16.msra.mxu0 0
        %345 = vmatpush.bf16.msra.mxu0 0
        %346 = vmatpush.bf16.msra.mxu0 0
        %347 = vmatpush.bf16.msra.mxu0 %v317
        %348 = vmatmul.bf16.gmra.mxu0 %v309
        %v349 = vpop.f32.mrf.mxu0
        %v350 = vadd.f32 %v297, %v349
        %v351 = vpop.f32.mrf.mxu0
        %v352 = vadd.f32 %v297, %v351
        %353 = vmatmul.bf16.gmra.mxu0 %v312
        %v354 = vpop.f32.mrf.mxu0
        %v355 = vadd.f32 %v297, %v354
        %v356 = vpop.f32.mrf.mxu0
        %v357 = vadd.f32 %v297, %v356
        %358 = vdwg.mxu0
        %359 = vmatpush.bf16.msra.mxu0 0
        %360 = vmatpush.bf16.msra.mxu0 0
        %361 = vmatpush.bf16.msra.mxu0 0
        %362 = vmatpush.bf16.msra.mxu0 0
        %363 = vmatpush.bf16.msra.mxu0 0
        %364 = vmatpush.bf16.msra.mxu0 0
        %365 = vmatpush.bf16.msra.mxu0 0
        %366 = vmatpush.bf16.msra.mxu0 %v319
        %367 = vmatmul.bf16.gmra.mxu0 %v309
        %v368 = vpop.f32.mrf.mxu0
        %v369 = vadd.f32 %v298, %v368
        %v370 = vpop.f32.mrf.mxu0
        %v371 = vadd.f32 %v298, %v370
        %372 = vmatmul.bf16.gmra.mxu0 %v312
        %v373 = vpop.f32.mrf.mxu0
        %v374 = vadd.f32 %v298, %v373
        %v375 = vpop.f32.mrf.mxu0
        %v376 = vadd.f32 %v298, %v375
        %377 = vdwg.mxu0
        %v378 = vld [vmem:[%s2] sm:$0xff]
        %v379 = vld [vmem:[%s2 + $0x8] sm:$0xf]
        %v380 = vld [vmem:[%s2 + $0xc] sm:$0xff]
        %v381 = vld [vmem:[%s2 + $0x14] sm:$0xf]
        %v382 = vld [vmem:[%s2 + $0x18] sm:$0xff]
        %v383 = vld [vmem:[%s2 + $0x20] sm:$0xf]
        %v384 = vld [vmem:[%s2 + $0x24] sm:$0xff]
        %v385 = vld [vmem:[%s2 + $0x2c] sm:$0xf]
        %v386 = vld [vmem:[%s2 + $0x30] sm:$0xff]
        %v387 = vld [vmem:[%s2 + $0x38] sm:$0xf]
        %v388 = vld [vmem:[%s2 + $0x3c] sm:$0xff]
        %v389 = vld [vmem:[%s2 + $0x44] sm:$0xf]
        %v390 = vld [vmem:[%s2 + $0x48] sm:$0xff]
        %v391 = vld [vmem:[%s2 + $0x50] sm:$0xf]
        %v392 = vld [vmem:[%s2 + $0x54] sm:$0xff]
        %v393 = vld [vmem:[%s2 + $0x5c] sm:$0xf]
        %v394 = vld [vmem:[%s2 + $0x60] sm:$0xff]
        %v395 = vld [vmem:[%s2 + $0x68] sm:$0xf]
        %v396 = vld [vmem:[%s2 + $0x6c] sm:$0xff]
        %v397 = vld [vmem:[%s2 + $0x74] sm:$0xf]
        %v398 = vld [vmem:[%s2 + $0x78] sm:$0xff]
        %v399 = vld [vmem:[%s2 + $0x80] sm:$0xf]
        %v400 = vld [vmem:[%s2 + $0x84] sm:$0xff]
        %v401 = vld [vmem:[%s2 + $0x8c] sm:$0xf]
        %v402 = vld [vmem:[%s2 + $0x90] sm:$0xff]
        %v403 = vld [vmem:[%s2 + $0x98] sm:$0xf]
        %v404 = vld [vmem:[%s2 + $0x9c] sm:$0xff]
        %v405 = vld [vmem:[%s2 + $0xa4] sm:$0xf]
        %v406 = vld [vmem:[%s2 + $0xa8] sm:$0xff]
        %v407 = vld [vmem:[%s2 + $0xb0] sm:$0xf]
        %v408 = vld [vmem:[%s2 + $0xb4] sm:$0xff]
        %v409 = vld [vmem:[%s2 + $0xbc] sm:$0xf]
        %v410 = vld [vmem:[%s4] sm:$0x1]
        %v412 = vperm.slane %v410, 0
        %v414 = vld [vmem:[#allocation2] sm:$0xff]
        %v415 = vpack.c.bf16 %v414, %v414
        %v448 = vunpack.c.l.b16 %v378
        %v449 = vunpack.c.h.b16 %v378
        %v450 = vunpack.c.l.b16 %v379
        %v451 = vunpack.c.l.b16 %v380
        %v452 = vunpack.c.h.b16 %v380
        %v453 = vunpack.c.l.b16 %v381
        %v454 = vunpack.c.l.b16 %v382
        %v455 = vunpack.c.h.b16 %v382
        %v456 = vunpack.c.l.b16 %v383
        %v457 = vunpack.c.l.b16 %v384
        %v458 = vunpack.c.h.b16 %v384
        %v459 = vunpack.c.l.b16 %v385
        %v460 = vunpack.c.l.b16 %v386
        %v461 = vunpack.c.h.b16 %v386
        %v462 = vunpack.c.l.b16 %v387
        %v463 = vunpack.c.l.b16 %v388
        %v464 = vunpack.c.h.b16 %v388
        %v465 = vunpack.c.l.b16 %v389
        %v466 = vunpack.c.l.b16 %v390
        %v467 = vunpack.c.h.b16 %v390
        %v468 = vunpack.c.l.b16 %v391
        %v469 = vunpack.c.l.b16 %v392
        %v470 = vunpack.c.h.b16 %v392
        %v471 = vunpack.c.l.b16 %v393
        %v472 = vunpack.c.l.b16 %v394
        %v473 = vunpack.c.h.b16 %v394
        %v474 = vunpack.c.l.b16 %v395
        %v475 = vunpack.c.l.b16 %v396
        %v476 = vunpack.c.h.b16 %v396
        %v477 = vunpack.c.l.b16 %v397
        %v478 = vunpack.c.l.b16 %v398
        %v479 = vunpack.c.h.b16 %v398
        %v480 = vunpack.c.l.b16 %v399
        %v481 = vunpack.c.l.b16 %v400
        %v482 = vunpack.c.h.b16 %v400
        %v483 = vunpack.c.l.b16 %v401
        %v484 = vunpack.c.l.b16 %v402
        %v485 = vunpack.c.h.b16 %v402
        %v486 = vunpack.c.l.b16 %v403
        %v487 = vunpack.c.l.b16 %v404
        %v488 = vunpack.c.h.b16 %v404
        %v489 = vunpack.c.l.b16 %v405
        %v490 = vunpack.c.l.b16 %v406
        %v491 = vunpack.c.h.b16 %v406
        %v492 = vunpack.c.l.b16 %v407
        %v493 = vunpack.c.l.b16 %v408
        %v494 = vunpack.c.h.b16 %v408
        %v495 = vunpack.c.l.b16 %v409
        %v496 = vpack.c.b16 %v451, %v448
        %v497 = vpack.c.b16 %v452, %v449
        %v498 = vpack.c.b16 %v453, %v450
        %v499 = vpack.c.b16 %v457, %v454
        %v500 = vpack.c.b16 %v458, %v455
        %v501 = vpack.c.b16 %v459, %v456
        %v502 = vpack.c.b16 %v463, %v460
        %v503 = vpack.c.b16 %v464, %v461
        %v504 = vpack.c.b16 %v465, %v462
        %v505 = vpack.c.b16 %v469, %v466
        %v506 = vpack.c.b16 %v470, %v467
        %v507 = vpack.c.b16 %v471, %v468
        %v508 = vpack.c.b16 %v475, %v472
        %v509 = vpack.c.b16 %v476, %v473
        %v510 = vpack.c.b16 %v477, %v474
        %v511 = vpack.c.b16 %v481, %v478
        %v512 = vpack.c.b16 %v482, %v479
        %v513 = vpack.c.b16 %v483, %v480
        %v514 = vpack.c.b16 %v487, %v484
        %v515 = vpack.c.b16 %v488, %v485
        %v516 = vpack.c.b16 %v489, %v486
        %v517 = vpack.c.b16 %v493, %v490
        %v518 = vpack.c.b16 %v494, %v491
        %v519 = vpack.c.b16 %v495, %v492
        %544 = vmatpush.bf16.msra.mxu0 %v517
        %545 = vmatpush.bf16.msra.mxu0 %v514
        %546 = vmatpush.bf16.msra.mxu0 %v511
        %547 = vmatpush.bf16.msra.mxu0 %v508
        %548 = vmatpush.bf16.msra.mxu0 %v505
        %549 = vmatpush.bf16.msra.mxu0 %v502
        %550 = vmatpush.bf16.msra.mxu0 %v499
        %551 = vmatpush.bf16.msra.mxu0 %v496
        %552 = vmatmul.bf16.gmra.mxu0 %v415
        %v553 = vpop.f32.mrf.mxu0
        %v554 = vadd.f32 0.0, %v553
        %v555 = vpop.f32.mrf.mxu0
        %556 = vdwg.mxu0
        %557 = vmatpush.bf16.msra.mxu0 %v518
        %558 = vmatpush.bf16.msra.mxu0 %v515
        %559 = vmatpush.bf16.msra.mxu0 %v512
        %560 = vmatpush.bf16.msra.mxu0 %v509
        %561 = vmatpush.bf16.msra.mxu0 %v506
        %562 = vmatpush.bf16.msra.mxu0 %v503
        %563 = vmatpush.bf16.msra.mxu0 %v500
        %564 = vmatpush.bf16.msra.mxu0 %v497
        %565 = vmatmul.bf16.gmra.mxu0 %v415
        %v566 = vpop.f32.mrf.mxu0
        %v567 = vadd.f32 0.0, %v566
        %v568 = vpop.f32.mrf.mxu0
        %569 = vdwg.mxu0
        %570 = vmatpush.bf16.msra.mxu0 %v519
        %571 = vmatpush.bf16.msra.mxu0 %v516
        %572 = vmatpush.bf16.msra.mxu0 %v513
        %573 = vmatpush.bf16.msra.mxu0 %v510
        %574 = vmatpush.bf16.msra.mxu0 %v507
        %575 = vmatpush.bf16.msra.mxu0 %v504
        %576 = vmatpush.bf16.msra.mxu0 %v501
        %577 = vmatpush.bf16.msra.mxu0 %v498
        %578 = vmatmul.bf16.gmra.mxu0 %v415
        %v579 = vpop.f32.mrf.mxu0
        %v580 = vadd.f32 0.0, %v579
        %v581 = vpop.f32.mrf.mxu0
        %582 = vdwg.mxu0
        %v583 = vadd.f32 %v331, %v554
        %v584 = vxor.u32 %v583, 2147483648
        %v585 = vmul.f32 %v584, 1.442695
        %v586 = vpow.pop %v585
        %v587 = vadd.f32 %v586, 1.0
        %v588 = vrcp.pop %v587
        %v589 = vmul.f32 %v587, %v588
        %v590 = vsub.f32 1.0, %v589
        %v591 = vmul.f32 %v588, %v590
        %v592 = vadd.f32 %v588, %v591
        %vm593 = vweird.f32 %v587
        %vm594 = vweird.f32 %v588
        %vm595 = vmor %vm593, %vm594
        %v596 = vsel %vm595, %v588, %v592
        %v597 = vand.u32 2147483647, %v587
        %vm598 = vcmp.eq.f32.partialorder %v597, 8.507059e+37
        %v599 = vand.u32 %v587, 2147483648
        %v600 = vor.u32 1.1754944e-38, %v599
        %v601 = vsel %vm598, %v600, %v596
        %v602 = vmul.f32 1.0, %v601
        %v603 = vadd.f32 %v350, %v567
        %v604 = vxor.u32 %v603, 2147483648
        %v605 = vmul.f32 %v604, 1.442695
        %v606 = vpow.pop %v605
        %v607 = vadd.f32 %v606, 1.0
        %v608 = vrcp.pop %v607
        %v609 = vmul.f32 %v607, %v608
        %v610 = vsub.f32 1.0, %v609
        %v611 = vmul.f32 %v608, %v610
        %v612 = vadd.f32 %v608, %v611
        %vm613 = vweird.f32 %v607
        %vm614 = vweird.f32 %v608
        %vm615 = vmor %vm613, %vm614
        %v616 = vsel %vm615, %v608, %v612
        %v617 = vand.u32 2147483647, %v607
        %vm618 = vcmp.eq.f32.partialorder %v617, 8.507059e+37
        %v619 = vand.u32 %v607, 2147483648
        %v620 = vor.u32 1.1754944e-38, %v619
        %v621 = vsel %vm618, %v620, %v616
        %v622 = vmul.f32 1.0, %v621
        %v623 = vadd.f32 %v580, %v412
        %v624 = vmul.f32 %v602, %v623
        %v625 = vadd.f32 %v369, %v624
        %v626 = vtanh.pop %v625
        %v627 = vsub.f32 %v414, %v626
        %v628 = vmul.f32 %v622, %v627
        %v629 = vadd.f32 %v626, %v628
        %v630 = vpack.c.bf16 %v629, %v629
        %631 = vmatpush.bf16.msra.mxu0 %v517
        %632 = vmatpush.bf16.msra.mxu0 %v514
        %633 = vmatpush.bf16.msra.mxu0 %v511
        %634 = vmatpush.bf16.msra.mxu0 %v508
        %635 = vmatpush.bf16.msra.mxu0 %v505
        %636 = vmatpush.bf16.msra.mxu0 %v502
        %637 = vmatpush.bf16.msra.mxu0 %v499
        %638 = vmatpush.bf16.msra.mxu0 %v496
        %639 = vmatmul.bf16.gmra.mxu0 %v630
        %v640 = vpop.f32.mrf.mxu0
        %v641 = vadd.f32 0.0, %v640
        %v642 = vpop.f32.mrf.mxu0
        %643 = vdwg.mxu0
        %644 = vmatpush.bf16.msra.mxu0 %v518
        %645 = vmatpush.bf16.msra.mxu0 %v515
        %646 = vmatpush.bf16.msra.mxu0 %v512
        %647 = vmatpush.bf16.msra.mxu0 %v509
        %648 = vmatpush.bf16.msra.mxu0 %v506
        %649 = vmatpush.bf16.msra.mxu0 %v503
        %650 = vmatpush.bf16.msra.mxu0 %v500
        %651 = vmatpush.bf16.msra.mxu0 %v497
        %652 = vmatmul.bf16.gmra.mxu0 %v630
        %v653 = vpop.f32.mrf.mxu0
        %v654 = vadd.f32 0.0, %v653
        %v655 = vpop.f32.mrf.mxu0
        %656 = vdwg.mxu0
        %657 = vmatpush.bf16.msra.mxu0 %v519
        %658 = vmatpush.bf16.msra.mxu0 %v516
        %659 = vmatpush.bf16.msra.mxu0 %v513
        %660 = vmatpush.bf16.msra.mxu0 %v510
        %661 = vmatpush.bf16.msra.mxu0 %v507
        %662 = vmatpush.bf16.msra.mxu0 %v504
        %663 = vmatpush.bf16.msra.mxu0 %v501
        %664 = vmatpush.bf16.msra.mxu0 %v498
        %665 = vmatmul.bf16.gmra.mxu0 %v630
        %v666 = vpop.f32.mrf.mxu0
        %v667 = vadd.f32 0.0, %v666
        %v668 = vpop.f32.mrf.mxu0
        %669 = vdwg.mxu0
        %v670 = vadd.f32 %v333, %v641
        %v671 = vxor.u32 %v670, 2147483648
        %v672 = vmul.f32 %v671, 1.442695
        %v673 = vpow.pop %v672
        %v674 = vadd.f32 %v673, 1.0
        %v675 = vrcp.pop %v674
        %v676 = vmul.f32 %v674, %v675
        %v677 = vsub.f32 1.0, %v676
        %v678 = vmul.f32 %v675, %v677
        %v679 = vadd.f32 %v675, %v678
        %vm680 = vweird.f32 %v674
        %vm681 = vweird.f32 %v675
        %vm682 = vmor %vm680, %vm681
        %v683 = vsel %vm682, %v675, %v679
        %v684 = vand.u32 2147483647, %v674
        %vm685 = vcmp.eq.f32.partialorder %v684, 8.507059e+37
        %v686 = vand.u32 %v674, 2147483648
        %v687 = vor.u32 1.1754944e-38, %v686
        %v688 = vsel %vm685, %v687, %v683
        %v689 = vmul.f32 1.0, %v688
        %v690 = vadd.f32 %v352, %v654
        %v691 = vxor.u32 %v690, 2147483648
        %v692 = vmul.f32 %v691, 1.442695
        %v693 = vpow.pop %v692
        %v694 = vadd.f32 %v693, 1.0
        %v695 = vrcp.pop %v694
        %v696 = vmul.f32 %v694, %v695
        %v697 = vsub.f32 1.0, %v696
        %v698 = vmul.f32 %v695, %v697
        %v699 = vadd.f32 %v695, %v698
        %vm700 = vweird.f32 %v694
        %vm701 = vweird.f32 %v695
        %vm702 = vmor %vm700, %vm701
        %v703 = vsel %vm702, %v695, %v699
        %v704 = vand.u32 2147483647, %v694
        %vm705 = vcmp.eq.f32.partialorder %v704, 8.507059e+37
        %v706 = vand.u32 %v694, 2147483648
        %v707 = vor.u32 1.1754944e-38, %v706
        %v708 = vsel %vm705, %v707, %v703
        %v709 = vmul.f32 1.0, %v708
        %v710 = vadd.f32 %v667, %v412
        %v711 = vmul.f32 %v689, %v710
        %v712 = vadd.f32 %v371, %v711
        %v713 = vtanh.pop %v712
        %v714 = vsub.f32 %v629, %v713
        %v715 = vmul.f32 %v709, %v714
        %v716 = vadd.f32 %v713, %v715
        %v717 = vpack.c.bf16 %v716, %v716
        %718 = vmatpush.bf16.msra.mxu0 %v517
        %719 = vmatpush.bf16.msra.mxu0 %v514
        %720 = vmatpush.bf16.msra.mxu0 %v511
        %721 = vmatpush.bf16.msra.mxu0 %v508
        %722 = vmatpush.bf16.msra.mxu0 %v505
        %723 = vmatpush.bf16.msra.mxu0 %v502
        %724 = vmatpush.bf16.msra.mxu0 %v499
        %725 = vmatpush.bf16.msra.mxu0 %v496
        %726 = vmatmul.bf16.gmra.mxu0 %v717
        %v727 = vpop.f32.mrf.mxu0
        %v728 = vadd.f32 0.0, %v727
        %v729 = vpop.f32.mrf.mxu0
        %730 = vdwg.mxu0
        %731 = vmatpush.bf16.msra.mxu0 %v518
        %732 = vmatpush.bf16.msra.mxu0 %v515
        %733 = vmatpush.bf16.msra.mxu0 %v512
        %734 = vmatpush.bf16.msra.mxu0 %v509
        %735 = vmatpush.bf16.msra.mxu0 %v506
        %736 = vmatpush.bf16.msra.mxu0 %v503
        %737 = vmatpush.bf16.msra.mxu0 %v500
        %738 = vmatpush.bf16.msra.mxu0 %v497
        %739 = vmatmul.bf16.gmra.mxu0 %v717
        %v740 = vpop.f32.mrf.mxu0
        %v741 = vadd.f32 0.0, %v740
        %v742 = vpop.f32.mrf.mxu0
        %743 = vdwg.mxu0
        %744 = vmatpush.bf16.msra.mxu0 %v519
        %745 = vmatpush.bf16.msra.mxu0 %v516
        %746 = vmatpush.bf16.msra.mxu0 %v513
        %747 = vmatpush.bf16.msra.mxu0 %v510
        %748 = vmatpush.bf16.msra.mxu0 %v507
        %749 = vmatpush.bf16.msra.mxu0 %v504
        %750 = vmatpush.bf16.msra.mxu0 %v501
        %751 = vmatpush.bf16.msra.mxu0 %v498
        %752 = vmatmul.bf16.gmra.mxu0 %v717
        %v753 = vpop.f32.mrf.mxu0
        %v754 = vadd.f32 0.0, %v753
        %v755 = vpop.f32.mrf.mxu0
        %756 = vdwg.mxu0
        %v757 = vadd.f32 %v336, %v728
        %v758 = vxor.u32 %v757, 2147483648
        %v759 = vmul.f32 %v758, 1.442695
        %v760 = vpow.pop %v759
        %v761 = vadd.f32 %v760, 1.0
        %v762 = vrcp.pop %v761
        %v763 = vmul.f32 %v761, %v762
        %v764 = vsub.f32 1.0, %v763
        %v765 = vmul.f32 %v762, %v764
        %v766 = vadd.f32 %v762, %v765
        %vm767 = vweird.f32 %v761
        %vm768 = vweird.f32 %v762
        %vm769 = vmor %vm767, %vm768
        %v770 = vsel %vm769, %v762, %v766
        %v771 = vand.u32 2147483647, %v761
        %vm772 = vcmp.eq.f32.partialorder %v771, 8.507059e+37
        %v773 = vand.u32 %v761, 2147483648
        %v774 = vor.u32 1.1754944e-38, %v773
        %v775 = vsel %vm772, %v774, %v770
        %v776 = vmul.f32 1.0, %v775
        %v777 = vadd.f32 %v355, %v741
        %v778 = vxor.u32 %v777, 2147483648
        %v779 = vmul.f32 %v778, 1.442695
        %v780 = vpow.pop %v779
        %v781 = vadd.f32 %v780, 1.0
        %v782 = vrcp.pop %v781
        %v783 = vmul.f32 %v781, %v782
        %v784 = vsub.f32 1.0, %v783
        %v785 = vmul.f32 %v782, %v784
        %v786 = vadd.f32 %v782, %v785
        %vm787 = vweird.f32 %v781
        %vm788 = vweird.f32 %v782
        %vm789 = vmor %vm787, %vm788
        %v790 = vsel %vm789, %v782, %v786
        %v791 = vand.u32 2147483647, %v781
        %vm792 = vcmp.eq.f32.partialorder %v791, 8.507059e+37
        %v793 = vand.u32 %v781, 2147483648
        %v794 = vor.u32 1.1754944e-38, %v793
        %v795 = vsel %vm792, %v794, %v790
        %v796 = vmul.f32 1.0, %v795
        %v797 = vadd.f32 %v754, %v412
        %v798 = vmul.f32 %v776, %v797
        %v799 = vadd.f32 %v374, %v798
        %v800 = vtanh.pop %v799
        %v801 = vsub.f32 %v716, %v800
        %v802 = vmul.f32 %v796, %v801
        %v803 = vadd.f32 %v800, %v802
        %v804 = vpack.c.bf16 %v803, %v803
        %805 = vmatpush.bf16.msra.mxu0 %v517
        %806 = vmatpush.bf16.msra.mxu0 %v514
        %807 = vmatpush.bf16.msra.mxu0 %v511
        %808 = vmatpush.bf16.msra.mxu0 %v508
        %809 = vmatpush.bf16.msra.mxu0 %v505
        %810 = vmatpush.bf16.msra.mxu0 %v502
        %811 = vmatpush.bf16.msra.mxu0 %v499
        %812 = vmatpush.bf16.msra.mxu0 %v496
        %813 = vmatmul.bf16.gmra.mxu0 %v804
        %v814 = vpop.f32.mrf.mxu0
        %v815 = vadd.f32 0.0, %v814
        %v816 = vpop.f32.mrf.mxu0
        %817 = vdwg.mxu0
        %818 = vmatpush.bf16.msra.mxu0 %v518
        %819 = vmatpush.bf16.msra.mxu0 %v515
        %820 = vmatpush.bf16.msra.mxu0 %v512
        %821 = vmatpush.bf16.msra.mxu0 %v509
        %822 = vmatpush.bf16.msra.mxu0 %v506
        %823 = vmatpush.bf16.msra.mxu0 %v503
        %824 = vmatpush.bf16.msra.mxu0 %v500
        %825 = vmatpush.bf16.msra.mxu0 %v497
        %826 = vmatmul.bf16.gmra.mxu0 %v804
        %v827 = vpop.f32.mrf.mxu0
        %v828 = vadd.f32 0.0, %v827
        %v829 = vpop.f32.mrf.mxu0
        %830 = vdwg.mxu0
        %831 = vmatpush.bf16.msra.mxu0 %v519
        %832 = vmatpush.bf16.msra.mxu0 %v516
        %833 = vmatpush.bf16.msra.mxu0 %v513
        %834 = vmatpush.bf16.msra.mxu0 %v510
        %835 = vmatpush.bf16.msra.mxu0 %v507
        %836 = vmatpush.bf16.msra.mxu0 %v504
        %837 = vmatpush.bf16.msra.mxu0 %v501
        %838 = vmatpush.bf16.msra.mxu0 %v498
        %839 = vmatmul.bf16.gmra.mxu0 %v804
        %v840 = vpop.f32.mrf.mxu0
        %v841 = vadd.f32 0.0, %v840
        %v842 = vpop.f32.mrf.mxu0
        %843 = vdwg.mxu0
        %v844 = vadd.f32 %v338, %v815
        %v845 = vxor.u32 %v844, 2147483648
        %v846 = vmul.f32 %v845, 1.442695
        %v847 = vpow.pop %v846
        %v848 = vadd.f32 %v847, 1.0
        %v849 = vrcp.pop %v848
        %v850 = vmul.f32 %v848, %v849
        %v851 = vsub.f32 1.0, %v850
        %v852 = vmul.f32 %v849, %v851
        %v853 = vadd.f32 %v849, %v852
        %vm854 = vweird.f32 %v848
        %vm855 = vweird.f32 %v849
        %vm856 = vmor %vm854, %vm855
        %v857 = vsel %vm856, %v849, %v853
        %v858 = vand.u32 2147483647, %v848
        %vm859 = vcmp.eq.f32.partialorder %v858, 8.507059e+37
        %v860 = vand.u32 %v848, 2147483648
        %v861 = vor.u32 1.1754944e-38, %v860
        %v862 = vsel %vm859, %v861, %v857
        %v863 = vmul.f32 1.0, %v862
        %v864 = vadd.f32 %v357, %v828
        %v865 = vxor.u32 %v864, 2147483648
        %v866 = vmul.f32 %v865, 1.442695
        %v867 = vpow.pop %v866
        %v868 = vadd.f32 %v867, 1.0
        %v869 = vrcp.pop %v868
        %v870 = vmul.f32 %v868, %v869
        %v871 = vsub.f32 1.0, %v870
        %v872 = vmul.f32 %v869, %v871
        %v873 = vadd.f32 %v869, %v872
        %vm874 = vweird.f32 %v868
        %vm875 = vweird.f32 %v869
        %vm876 = vmor %vm874, %vm875
        %v877 = vsel %vm876, %v869, %v873
        %v878 = vand.u32 2147483647, %v868
        %vm879 = vcmp.eq.f32.partialorder %v878, 8.507059e+37
        %v880 = vand.u32 %v868, 2147483648
        %v881 = vor.u32 1.1754944e-38, %v880
        %v882 = vsel %vm879, %v881, %v877
        %v883 = vmul.f32 1.0, %v882
        %v884 = vadd.f32 %v841, %v412
        %v885 = vmul.f32 %v863, %v884
        %v886 = vadd.f32 %v376, %v885
        %v887 = vtanh.pop %v886
        %v888 = vsub.f32 %v803, %v887
        %v889 = vmul.f32 %v883, %v888
        %v890 = vadd.f32 %v887, %v889
        %891 = vst [vmem:[#allocation2] sm:$0xff] %v890
        %p892 = scmp.eq.s32.totalorder %s19, 1
        // Predicated region
        $region57: #{tpu_custom_call.1} parent=47 // pred_check
          %p893 = pneg %p892
        $region58: #{tpu_custom_call.1} parent=47 // pred_check_branch
          %895 = sbr.rel (%p893) target = $region60
        $region59: #{tpu_custom_call.1} parent=47 // pred_region
          %v896 = vld [vmem:[%s5] sm:$0xff]
          %v897 = vld [vmem:[%s5 + $0x8] sm:$0xff]
          %v898 = vld [vmem:[%s5 + $0x10] sm:$0xff]
          %v899 = vld [vmem:[%s5 + $0x18] sm:$0xff]
          %v900 = vld [vmem:[%s5 + $0x20] sm:$0xff]
          %v901 = vld [vmem:[%s5 + $0x28] sm:$0xff]
          %v902 = vld [vmem:[%s5 + $0x30] sm:$0xff]
          %v903 = vld [vmem:[%s5 + $0x38] sm:$0xff]
          %v904 = vld [vmem:[%s5 + $0x40] sm:$0xff]
          %v905 = vld [vmem:[%s5 + $0x48] sm:$0xff]
          %v906 = vld [vmem:[%s5 + $0x50] sm:$0xff]
          %v907 = vld [vmem:[%s5 + $0x58] sm:$0xff]
          %v908 = vld [vmem:[%s5 + $0x60] sm:$0xff]
          %v909 = vld [vmem:[%s5 + $0x68] sm:$0xff]
          %v910 = vld [vmem:[%s5 + $0x70] sm:$0xff]
          %v911 = vld [vmem:[%s5 + $0x78] sm:$0xff]
          %v912 = vld [vmem:[%s6] sm:$0x1]
          %v914 = vperm.slane %v912, 0
          %916 = vmatpush.msra.mxu0 %v911
          %917 = vmatpush.msra.mxu0 %v910
          %918 = vmatpush.msra.mxu0 %v909
          %919 = vmatpush.msra.mxu0 %v908
          %920 = vmatpush.msra.mxu0 %v907
          %921 = vmatpush.msra.mxu0 %v906
          %922 = vmatpush.msra.mxu0 %v905
          %923 = vmatpush.msra.mxu0 %v904
          %924 = vmatpush.msra.mxu0 %v903
          %925 = vmatpush.msra.mxu0 %v902
          %926 = vmatpush.msra.mxu0 %v901
          %927 = vmatpush.msra.mxu0 %v900
          %928 = vmatpush.msra.mxu0 %v899
          %929 = vmatpush.msra.mxu0 %v898
          %930 = vmatpush.msra.mxu0 %v897
          %931 = vmatpush.msra.mxu0 %v896
          %932 = vmatmul.f32.gmra.mxu0 %v890
          %v933 = vpop.f32.mrf.mxu0
          %v934 = vadd.f32 %v914, %v933
          %935 = vdwg.mxu0
          %936 = vst.msk [vmem:[%s7] sm:$0xff] %vm307, %v934
        $region60: #{tpu_custom_call.1} parent=47 // pred_fallthru
          _
        // Predicated region
        $region61: #{tpu_custom_call.1} parent=47 // pred_check
          %p937 = pneg %p184
        $region62: #{tpu_custom_call.1} parent=47 // pred_check_branch
          %939 = sbr.rel (%p937) target = $region64
        $region63: #{tpu_custom_call.1} parent=47 // pred_region
          _
        $region64: #{tpu_custom_call.1} parent=47 // pred_fallthru
          _
        // Predicated region
        $region65: #{tpu_custom_call.1} parent=47 // pred_check
          %p940 = pneg %p184
        $region66: #{tpu_custom_call.1} parent=47 // pred_check_branch
          %942 = sbr.rel (%p940) target = $region68
        $region67: #{tpu_custom_call.1} parent=47 // pred_region
          _
        $region68: #{tpu_custom_call.1} parent=47 // pred_fallthru
          _
      $region48: #{tpu_custom_call.1} parent=5 // pred_fallthru
        _
      %p943 = scmp.le.s32.totalorder 2, %s14
      // Predicated region
      $region69: #{tpu_custom_call.1} parent=5 // pred_check
        %p944 = pneg %p943
      $region70: #{tpu_custom_call.1} parent=5 // pred_check_branch
        %946 = sbr.rel (%p944) target = $region72
      $region71: #{tpu_custom_call.1} parent=5 // pred_region
        %s947 = ssub.s32 %s14, 2
      $region72: #{tpu_custom_call.1} parent=5 // pred_fallthru
        _
    $region6: #{tpu_custom_call.1} parent=1 // loop_footer
      %s18 = sadd.s32 1, %s14
    $region7: #{tpu_custom_call.1} parent=1 // loop_footer_branch
      %13 = sbr.rel target = $region3
    $region8: #{tpu_custom_call.1} parent=1 // loop_exit
      _
    %948 = vsyncpa [#allocation4], 1
    %s949 = scalar_lea.sflag [#allocation4], 1
    %950 = vsyncpa %s949, 1

</llo_original>
